<compile_context>
chip_gen: v7x
topology: tpu7x:2x2x1
jax: 0.10.0
libtpu: 0.0.40
codegen_flags: <defaults>
</compile_context>

<pallas_src>
import functools

import jax
import jax.numpy as jnp
from jax.experimental import pallas as pl
from jax.experimental.pallas import tpu as pltpu


def _addnorm_kernel(x_ref, y_ref, w_ref, b_ref, o_ref, *, eps, inv_d):
    # x_ref, y_ref, o_ref: (TR, D)   w_ref, b_ref: (1, D)
    # Hoist the tiny weight/bias casts out of the arithmetic expression.
    w = w_ref[...].astype(jnp.float32)
    b = b_ref[...].astype(jnp.float32)

    s = x_ref[...].astype(jnp.float32) + y_ref[...].astype(jnp.float32)

    # Centered (two-pass) reduction: matches nn.LayerNorm numerics even when
    # |mean| >> std. XLU/VPU have ample slack here (HBM-bandwidth bound).
    mean = jnp.sum(s, axis=-1, keepdims=True) * inv_d
    c = s - mean
    var = jnp.sum(c * c, axis=-1, keepdims=True) * inv_d
    inv = jax.lax.rsqrt(var + eps)

    o_ref[...] = (c * inv * w + b).astype(o_ref.dtype)


# Packed sublane tile height per itemsize (f32 -> 8, bf16 -> 16, int8/fp8 -> 32).
_SUBLANE_PACK = {4: 8, 2: 16, 1: 32}


def _round_up(x, m):
    return ((x + m - 1) // m) * m


def _vmem_capacity_bytes():
    """Physical VMEM per TensorCore, with a device_kind-based fallback."""
    try:
        return int(pltpu.get_tpu_info().vmem_capacity_bytes)
    except Exception:
        pass
    try:
        kind = jax.devices()[0].device_kind.lower()
    except Exception:
        kind = ""
    if "v7" in kind:               # v7x: 64 MiB per TC
        return 64 * 1024 * 1024
    return 128 * 1024 * 1024       # v5e/v6e (and older): 128 MiB


def _pick_tiling(rows, d, itemsize):
    """Derive (row_tile, vmem_limit_bytes) from this chip's VMEM budget."""
    vmem_cap = _vmem_capacity_bytes()
    # Scoped limit well above the 16/32 MiB defaults, headroom below physical
    # (v7x -> 48 MiB, v5e/v6e -> 96 MiB).
    vmem_limit = min((vmem_cap * 3) // 4, 96 * 1024 * 1024)

    # Explicit per-row byte model:
    #   pipelined blocks: (x + y + out) x 2 buffers = 6 * d * itemsize
    #   f32 intermediates Mosaic materialises (s + centered temp) ~= 2 * d * 4
    per_row_blocks = 6 * d * itemsize
    per_row_total = per_row_blocks + 2 * d * 4
    # Commit ~2/3 of the scoped limit to blocks + temps.
    budget = (vmem_limit * 2) // 3

    pack = _SUBLANE_PACK.get(itemsize, 8)
    tr = budget // per_row_total

    # Per-streamed-block byte cap (~4 MiB): HBM roofline knee; avoids extra
    # grid steps for small-d/bf16 shapes and over-allocation for huge d.
    max_block_bytes = 4 * 1024 * 1024
    tr = min(tr, max(max_block_bytes // (d * itemsize), pack))

    tr = min(tr, _round_up(rows, pack))      # never ask for more than the array
    if rows >= 4 * pack:
        # >= 4 grid steps -> >= 2 steps per TensorCore on v7x (keeps intra-core
        # double-buffering + load balance); no effect on single-TC chips.
        tr = min(tr, _round_up(pl.cdiv(rows, 4), pack))
    tr = max((tr // pack) * pack, pack)      # multiple of the sublane pack

    # Guard: even one sublane pack of an extremely large d must fit the limit.
    needed = tr * per_row_total
    if needed > vmem_limit:
        vmem_limit = min(needed + (1 << 20), (vmem_cap * 7) // 8)
    return tr, int(vmem_limit)


def _add_norm_xla(x, sublayer_output, weight, bias, eps):
    """Fused XLA path for narrow embed dims (d < 128): lane axis would be
    under-utilized and stores masked in the Pallas path."""
    s = (x + sublayer_output).astype(jnp.float32)
    mean = jnp.mean(s, axis=-1, keepdims=True)
    c = s - mean
    var = jnp.mean(c * c, axis=-1, keepdims=True)
    out = c * jax.lax.rsqrt(var + eps) * weight.astype(jnp.float32) \
        + bias.astype(jnp.float32)
    return out.astype(x.dtype)


def add_norm(x, sublayer_output, weight, bias, *, eps=1e-6):
    """LayerNorm(x + sublayer_output) over the last dimension."""
    assert x.shape == sublayer_output.shape
    orig_shape = x.shape
    d = orig_shape[-1]

    # Narrow embed dim: lane density < 100% -> fused XLA path wins.
    if d < 128:
        return _add_norm_xla(x, sublayer_output, weight, bias, eps)

    rows = 1
    for s in orig_shape[:-1]:
        rows *= s

    x2 = x.reshape(rows, d)
    y2 = sublayer_output.reshape(rows, d)
    w2 = weight.reshape(1, d)
    b2 = bias.reshape(1, d)

    itemsize = jnp.dtype(x.dtype).itemsize
    tr, vmem_limit = _pick_tiling(rows, d, itemsize)
    grid = (pl.cdiv(rows, tr),)  # partial last block handled by Pallas masking

    kernel = functools.partial(_addnorm_kernel, eps=eps, inv_d=1.0 / d)

    w_itemsize = jnp.dtype(weight.dtype).itemsize
    cost = pl.CostEstimate(
        flops=8 * rows * d,
        transcendentals=rows,                      # one rsqrt per row
        bytes_accessed=3 * rows * d * itemsize + 2 * d * w_itemsize,
    )

    # NOTE: pipeline_mode=pl.Buffered(3) on the two streamed inputs is a
    # possible sweep on v6e (hide writeback bubbles); left at the default
    # double-buffering since it is not a guaranteed win.
    out2 = pl.pallas_call(
        kernel,
        out_shape=jax.ShapeDtypeStruct((rows, d), x.dtype),
        grid_spec=pltpu.PrefetchScalarGridSpec(
            num_scalar_prefetch=0,
            grid=grid,
            in_specs=[
                pl.BlockSpec((tr, d), lambda i: (i, 0)),
                pl.BlockSpec((tr, d), lambda i: (i, 0)),
                pl.BlockSpec((1, d), lambda i: (0, 0)),
                pl.BlockSpec((1, d), lambda i: (0, 0)),
            ],
            out_specs=pl.BlockSpec((tr, d), lambda i: (i, 0)),
        ),
        compiler_params=pltpu.CompilerParams(
            dimension_semantics=("parallel",),
            vmem_limit_bytes=vmem_limit,
        ),
        cost_estimate=cost,
    )(x2, y2, w2, b2)

    return out2.reshape(orig_shape)


def _reference(x, sub, w, b, eps):
    s = x + sub
    mean = jnp.mean(s, axis=-1, keepdims=True)
    var = jnp.mean((s - mean) ** 2, axis=-1, keepdims=True)
    return (s - mean) / jnp.sqrt(var + eps) * w + b


if __name__ == "__main__":
    eps = 1e-6

    # Case 1: lane-dense embed dim (multiple of 128), rows divisible by 8.
    batch, seq, embed_dim = 2, 8, 128
    kx, ky = jax.random.split(jax.random.PRNGKey(0))
    x = jax.random.normal(kx, (batch, seq, embed_dim), dtype=jnp.float32)
    sub = jax.random.normal(ky, (batch, seq, embed_dim), dtype=jnp.float32)
    # nn.LayerNorm default init: weight = ones, bias = zeros (deterministic).
    weight = jnp.ones((embed_dim,), dtype=jnp.float32)
    bias = jnp.zeros((embed_dim,), dtype=jnp.float32)

    out = jax.block_until_ready(add_norm(x, sub, weight, bias, eps=eps))
    ref = _reference(x, sub, weight, bias, eps)
    assert out.shape == ref.shape
    assert jnp.allclose(out, ref, atol=1e-4, rtol=1e-4), "mismatch (case 1)"

    # Case 2: rows not a multiple of the sublane tile, lane-dense d
    # (exercises the masked partial last block in the Pallas path).
    batch2, seq2, embed_dim2 = 3, 5, 256
    k1, k2 = jax.random.split(jax.random.PRNGKey(0))
    x2 = jax.random.normal(k1, (batch2, seq2, embed_dim2), dtype=jnp.float32)
    sub2 = jax.random.normal(k2, (batch2, seq2, embed_dim2), dtype=jnp.float32)
    w2 = jnp.ones((embed_dim2,), dtype=jnp.float32)
    b2 = jnp.zeros((embed_dim2,), dtype=jnp.float32)

    out2 = jax.block_until_ready(add_norm(x2, sub2, w2, b2, eps=eps))
    ref2 = _reference(x2, sub2, w2, b2, eps)
    assert jnp.allclose(out2, ref2, atol=1e-4, rtol=1e-4), "mismatch (case 2)"

    # Case 3: narrow embed dim -> fused XLA dispatch path.
    batch3, seq3, embed_dim3 = 2, 7, 32
    k3, k4 = jax.random.split(jax.random.PRNGKey(1))
    x3 = jax.random.normal(k3, (batch3, seq3, embed_dim3), dtype=jnp.float32)
    sub3 = jax.random.normal(k4, (batch3, seq3, embed_dim3), dtype=jnp.float32)
    w3 = jnp.ones((embed_dim3,), dtype=jnp.float32)
    b3 = jnp.zeros((embed_dim3,), dtype=jnp.float32)

    out3 = jax.block_until_ready(add_norm(x3, sub3, w3, b3, eps=eps))
    ref3 = _reference(x3, sub3, w3, b3, eps)
    assert jnp.allclose(out3, ref3, atol=1e-4, rtol=1e-4), "mismatch (case 3)"

    print("KERNEL_OK")
</pallas_src>

<mosaic_0001>
module attributes {stable_mosaic.version = 11 : i64} {
  func.func @_addnorm_kernel(%arg0: i32, %arg1: memref<16x128xf32, #tpu.memory_space<vmem>>, %arg2: memref<16x128xf32, #tpu.memory_space<vmem>>, %arg3: memref<1x128xf32, #tpu.memory_space<vmem>>, %arg4: memref<1x128xf32, #tpu.memory_space<vmem>>, %arg5: memref<16x128xf32, #tpu.memory_space<vmem>>) attributes {dimension_semantics = [#tpu.dimension_semantics<parallel>], iteration_bounds = array<i64: 1>, scalar_prefetch = 0 : i64, scratch_operands = 0 : i64, tpu.core_type = #tpu.core_type<tc>, window_params = [{transform_indices = @transform_0, window_bounds = array<i64: 16, 128>}, {transform_indices = @transform_1, window_bounds = array<i64: 16, 128>}, {pipeline_mode = #tpu.pipeline_mode<synchronous>, transform_indices = @transform_2, window_bounds = array<i64: 1, 128>}, {pipeline_mode = #tpu.pipeline_mode<synchronous>, transform_indices = @transform_3, window_bounds = array<i64: 1, 128>}, {transform_indices = @transform_4, window_bounds = array<i64: 16, 128>}]} {
    %c0 = arith.constant 0 : index
    %c0_0 = arith.constant 0 : index
    %0 = vector.load %arg3[%c0, %c0_0] : memref<1x128xf32, #tpu.memory_space<vmem>>, vector<1x128xf32>
    %c0_1 = arith.constant 0 : index
    %c0_2 = arith.constant 0 : index
    %1 = vector.load %arg4[%c0_1, %c0_2] : memref<1x128xf32, #tpu.memory_space<vmem>>, vector<1x128xf32>
    %c0_3 = arith.constant 0 : index
    %c0_4 = arith.constant 0 : index
    %2 = vector.load %arg1[%c0_3, %c0_4] : memref<16x128xf32, #tpu.memory_space<vmem>>, vector<16x128xf32>
    %c0_5 = arith.constant 0 : index
    %c0_6 = arith.constant 0 : index
    %3 = vector.load %arg2[%c0_5, %c0_6] : memref<16x128xf32, #tpu.memory_space<vmem>>, vector<16x128xf32>
    %4 = arith.addf %2, %3 : vector<16x128xf32>
    %cst = arith.constant dense<0.000000e+00> : vector<16xf32>
    %5 = vector.multi_reduction <add>, %4, %cst [1] : vector<16x128xf32> to vector<16xf32>
    %6 = vector.shape_cast %5 : vector<16xf32> to vector<16x1xf32>
    %cst_7 = arith.constant 7.812500e-03 : f32
    %7 = vector.broadcast %cst_7 : f32 to vector<16x1xf32>
    %8 = arith.mulf %6, %7 : vector<16x1xf32>
    %9 = vector.broadcast %8 : vector<16x1xf32> to vector<16x128xf32>
    %10 = arith.subf %4, %9 : vector<16x128xf32>
    %11 = arith.mulf %10, %10 : vector<16x128xf32>
    %cst_8 = arith.constant dense<0.000000e+00> : vector<16xf32>
    %12 = vector.multi_reduction <add>, %11, %cst_8 [1] : vector<16x128xf32> to vector<16xf32>
    %13 = vector.shape_cast %12 : vector<16xf32> to vector<16x1xf32>
    %cst_9 = arith.constant 7.812500e-03 : f32
    %14 = vector.broadcast %cst_9 : f32 to vector<16x1xf32>
    %15 = arith.mulf %13, %14 : vector<16x1xf32>
    %cst_10 = arith.constant 9.99999997E-7 : f32
    %16 = vector.broadcast %cst_10 : f32 to vector<16x1xf32>
    %17 = arith.addf %15, %16 : vector<16x1xf32>
    %18 = math.rsqrt %17 : vector<16x1xf32>
    %19 = vector.broadcast %18 : vector<16x1xf32> to vector<16x128xf32>
    %20 = arith.mulf %10, %19 : vector<16x128xf32>
    %21 = vector.broadcast %0 : vector<1x128xf32> to vector<16x128xf32>
    %22 = arith.mulf %20, %21 : vector<16x128xf32>
    %23 = vector.broadcast %1 : vector<1x128xf32> to vector<16x128xf32>
    %24 = arith.addf %22, %23 : vector<16x128xf32>
    %c0_11 = arith.constant 0 : index
    %c0_12 = arith.constant 0 : index
    %25 = vector.load %arg5[%c0_11, %c0_12] : memref<16x128xf32, #tpu.memory_space<vmem>>, vector<16x128xf32>
    tpu.vector_store %arg5[%c0_11, %c0_12], %24 {strides = array<i32>} : memref<16x128xf32, #tpu.memory_space<vmem>>, vector<16x128xf32>,
    return
  }
  func.func @transform_0(%arg0: i32) -> (i32, i32) {
    %c0_i32 = arith.constant 0 : i32
    %c0_i32_0 = arith.constant 0 : i32
    return %arg0, %c0_i32 : i32, i32
  }
  func.func @transform_1(%arg0: i32) -> (i32, i32) {
    %c0_i32 = arith.constant 0 : i32
    %c0_i32_0 = arith.constant 0 : i32
    return %arg0, %c0_i32 : i32, i32
  }
  func.func @transform_2(%arg0: i32) -> (i32, i32) {
    %c0_i32 = arith.constant 0 : i32
    %c0_i32_0 = arith.constant 0 : i32
    %c0_i32_1 = arith.constant 0 : i32
    return %c0_i32, %c0_i32_0 : i32, i32
  }
  func.func @transform_3(%arg0: i32) -> (i32, i32) {
    %c0_i32 = arith.constant 0 : i32
    %c0_i32_0 = arith.constant 0 : i32
    %c0_i32_1 = arith.constant 0 : i32
    return %c0_i32, %c0_i32_0 : i32, i32
  }
  func.func @transform_4(%arg0: i32) -> (i32, i32) {
    %c0_i32 = arith.constant 0 : i32
    %c0_i32_0 = arith.constant 0 : i32
    return %arg0, %c0_i32 : i32, i32
  }
}

</mosaic_0001>

<llo_original>
// kernel: tpu_custom_call.1
$region0: #{tpu_custom_call.1}
  #allocation0 [shape = 'u32[]', space=smem, size = 0x4, offset = 0x4, fixed_abs, tag = 'smem constant byte address 0x4 - core index']
  #allocation1 [shape = 'u32[144,128]{1,0:T(1,128)}', space=vmem, size = 0x12000, scoped, tag = 'internal scratch']
  %s0 = inlined_call_operand.hbm [shape: f32[16,128], index: 0, kind: input, shape index: {}]
  %s1 = inlined_call_operand.hbm [shape: f32[16,128], index: 1, kind: input, shape index: {}]
  %s2 = inlined_call_operand.hbm [shape: f32[1,128], index: 2, kind: input, shape index: {}]
  %s3 = inlined_call_operand.hbm [shape: f32[1,128], index: 3, kind: input, shape index: {}]
  %s4 = inlined_call_operand.hbm [shape: f32[16,128], index: 4, kind: output, shape index: {}]
  %s5 = sld [smem:[#allocation0]]
  $region42: #{tpu_custom_call.1} parent=0
    _
  %s7 = ssub.s32 1, %s5
  %s8 = scalar_select 0, %s7, %s5
  $region1: #{tpu_custom_call.1} parent=0
    #allocation2 [shape = 'u8[8192]{0}', space=vmem, size = 0x2000, scoped, tag = 'input window, operand 0, single buffered']
    #allocation3 [shape = 's32[1]{0}', space=sflag, size = 0x4, scoped, tag = 'scoped memory for tpu_custom_call.1']
    #allocation4 [shape = 's32[1]{0}', space=sflag, size = 0x4, scoped, tag = 'scoped memory for tpu_custom_call.1']
    #allocation5 [shape = 'u8[8192]{0}', space=vmem, size = 0x2000, scoped, tag = 'input window, operand 1, single buffered']
    #allocation6 [shape = 's32[1]{0}', space=sflag, size = 0x4, scoped, tag = 'scoped memory for tpu_custom_call.1']
    #allocation7 [shape = 'u8[512]{0}', space=vmem, size = 0x400, scoped, tag = 'input window, operand 2, single buffered']
    #allocation8 [shape = 'u8[512]{0}', space=vmem, size = 0x400, scoped, tag = 'input window, operand 3, single buffered']
    #allocation9 [shape = 's32[1]{0}', space=sflag, size = 0x4, scoped, tag = 'scoped memory for tpu_custom_call.1']
    #allocation10 [shape = 'u8[8192]{0}', space=vmem, size = 0x2000, scoped, tag = 'output window, operand 0, single buffered']
    %9 = vsyncpa [#allocation3], 0
    %10 = vsyncpa [#allocation6], 0
    %11 = vsyncpa [#allocation9], 0
    %12 = vsyncpa [#allocation4], 0
    // Predicated region
    $region2: #{tpu_custom_call.1} parent=1 // pred_check
      _
    $region3: #{tpu_custom_call.1} parent=1 // pred_check_branch
      %14 = sbr.rel (0) target = $region5
    $region4: #{tpu_custom_call.1} parent=1 // pred_region
      %s16 = ssub.s32 256, 256
      %17 = vsyncadd [#allocation3], %s16
      %s18 = sshll.u32 [#allocation2], 4
      %s19 = int_to_ptr.vmem [resolvable:$true] %s18
      %24 = dma.hbm_to_vmem [thread:$0]  %s0, 256, %s19, [#allocation3], 128, 128, 8
    $region5: #{tpu_custom_call.1} parent=1 // pred_fallthru
      _
    // Predicated region
    $region6: #{tpu_custom_call.1} parent=1 // pred_check
      _
    $region7: #{tpu_custom_call.1} parent=1 // pred_check_branch
      %26 = sbr.rel (0) target = $region9
    $region8: #{tpu_custom_call.1} parent=1 // pred_region
      %s28 = ssub.s32 256, 256
      %29 = vsyncadd [#allocation6], %s28
      %s30 = sshll.u32 [#allocation5], 4
      %s31 = int_to_ptr.vmem [resolvable:$true] %s30
      %36 = dma.hbm_to_vmem [thread:$0]  %s1, 256, %s31, [#allocation6], 128, 128, 8
    $region9: #{tpu_custom_call.1} parent=1 // pred_fallthru
      _
    // Predicated region
    $region10: #{tpu_custom_call.1} parent=1 // pred_check
      _
    $region11: #{tpu_custom_call.1} parent=1 // pred_check_branch
      %38 = sbr.rel (0) target = $region13
    $region12: #{tpu_custom_call.1} parent=1 // pred_region
      %s40 = ssub.s32 16, 16
      %41 = vsyncadd [#allocation6], %s40
      %s43 = sshll.u32 [#allocation7], 4
      %s44 = int_to_ptr.vmem [resolvable:$true] %s43
      %46 = dma.hbm_to_vmem [thread:$0]  %s2, 16, %s44, [#allocation6]
    $region13: #{tpu_custom_call.1} parent=1 // pred_fallthru
      _
    // Predicated region
    $region14: #{tpu_custom_call.1} parent=1 // pred_check
      _
    $region15: #{tpu_custom_call.1} parent=1 // pred_check_branch
      %48 = sbr.rel (0) target = $region17
    $region16: #{tpu_custom_call.1} parent=1 // pred_region
      %s50 = ssub.s32 16, 16
      %51 = vsyncadd [#allocation9], %s50
      %s53 = sshll.u32 [#allocation8], 4
      %s54 = int_to_ptr.vmem [resolvable:$true] %s53
      %56 = dma.hbm_to_vmem [thread:$0]  %s3, 16, %s54, [#allocation9]
    $region17: #{tpu_custom_call.1} parent=1 // pred_fallthru
      _
    // Predicated region
    $region18: #{tpu_custom_call.1} parent=1 // pred_check
      _
    $region19: #{tpu_custom_call.1} parent=1 // pred_check_branch
      %58 = sbr.rel (0) target = $region21
    $region20: #{tpu_custom_call.1} parent=1 // pred_region
      %59 = dma.done [#allocation3], 256
    $region21: #{tpu_custom_call.1} parent=1 // pred_fallthru
      _
    // Predicated region
    $region22: #{tpu_custom_call.1} parent=1 // pred_check
      _
    $region23: #{tpu_custom_call.1} parent=1 // pred_check_branch
      %61 = sbr.rel (0) target = $region25
    $region24: #{tpu_custom_call.1} parent=1 // pred_region
      %62 = dma.done [#allocation6], 256
    $region25: #{tpu_custom_call.1} parent=1 // pred_fallthru
      _
    // Predicated region
    $region26: #{tpu_custom_call.1} parent=1 // pred_check
      _
    $region27: #{tpu_custom_call.1} parent=1 // pred_check_branch
      %64 = sbr.rel (0) target = $region29
    $region28: #{tpu_custom_call.1} parent=1 // pred_region
      %65 = dma.done [#allocation6], 16
    $region29: #{tpu_custom_call.1} parent=1 // pred_fallthru
      _
    // Predicated region
    $region30: #{tpu_custom_call.1} parent=1 // pred_check
      _
    $region31: #{tpu_custom_call.1} parent=1 // pred_check_branch
      %67 = sbr.rel (0) target = $region33
    $region32: #{tpu_custom_call.1} parent=1 // pred_region
      %68 = dma.done [#allocation9], 16
    $region33: #{tpu_custom_call.1} parent=1 // pred_fallthru
      _
    %v69 = vld [vmem:[#allocation7] sm:$0x1]
    %v70 = vld [vmem:[#allocation8] sm:$0x1]
    %v71 = vld [vmem:[#allocation2] sm:$0xff]
    %v72 = vld [vmem:[#allocation2 + $0x8] sm:$0xff]
    %v73 = vld [vmem:[#allocation5] sm:$0xff]
    %v74 = vld [vmem:[#allocation5 + $0x8] sm:$0xff]
    %v75 = vadd.f32 %v71, %v73
    %v76 = vadd.f32 %v72, %v74
    %77 = vadd.xlane.f32.xlu0 %v75
    %v78 = vpop.xlane.xlu0 %77
    %79 = vadd.xlane.f32.xlu0 %v76
    %v80 = vpop.xlane.xlu0 %79
    %v81 = vmul.f32 %v78, 0.0078125
    %v82 = vmul.f32 %v80, 0.0078125
    %v83 = vsub.f32 %v75, %v81
    %v84 = vsub.f32 %v76, %v82
    %v85 = vmul.f32 %v83, %v83
    %v86 = vmul.f32 %v84, %v84
    %87 = vadd.xlane.f32.xlu0 %v85
    %v88 = vpop.xlane.xlu0 %87
    %89 = vadd.xlane.f32.xlu0 %v86
    %v90 = vpop.xlane.xlu0 %89
    %v91 = vmul.f32 %v88, 0.0078125
    %v92 = vmul.f32 %v90, 0.0078125
    %v93 = vadd.f32 %v91, 1e-06
    %v94 = vadd.f32 %v92, 1e-06
    %v95 = vrsqrt.pop %v93
    %v96 = vrsqrt.pop %v94
    %v97 = vmul.f32 %v83, %v95
    %v98 = vmul.f32 %v84, %v96
    %v100 = vlaneseq
    %v101 = vshrl.u32 %v100, 7
    %v102 = vsub.s32 0, %v101
    %v103 = vrot.slane %v69, %v102
    %v105 = vmul.f32 %v97, %v103
    %v106 = vmul.f32 %v98, %v103
    %v108 = vlaneseq
    %v109 = vshrl.u32 %v108, 7
    %v110 = vsub.s32 0, %v109
    %v111 = vrot.slane %v70, %v110
    %v113 = vadd.f32 %v105, %v111
    %v114 = vadd.f32 %v106, %v111
    %115 = vst [vmem:[#allocation10] sm:$0xff] %v113
    %116 = vst [vmem:[#allocation10 + $0x8] sm:$0xff] %v114
    // Predicated region
    $region34: #{tpu_custom_call.1} parent=1 // pred_check
      _
    $region35: #{tpu_custom_call.1} parent=1 // pred_check_branch
      %118 = sbr.rel (0) target = $region37
    $region36: #{tpu_custom_call.1} parent=1 // pred_region
      %s120 = ssub.s32 256, 256
      %121 = vsyncadd [#allocation4], %s120
      %s122 = sshll.u32 [#allocation10], 4
      %s123 = int_to_ptr.vmem [resolvable:$true] %s122
      %128 = dma.vmem_to_hbm [thread:$0]  %s123, 256, %s4, [#allocation4], 128, 128, 8
    $region37: #{tpu_custom_call.1} parent=1 // pred_fallthru
      _
    // Predicated region
    $region38: #{tpu_custom_call.1} parent=1 // pred_check
      _
    $region39: #{tpu_custom_call.1} parent=1 // pred_check_branch
      %130 = sbr.rel (0) target = $region41
    $region40: #{tpu_custom_call.1} parent=1 // pred_region
      %131 = dma.done [#allocation4], 256
    $region41: #{tpu_custom_call.1} parent=1 // pred_fallthru
      _
    %132 = vsyncpa [#allocation3], 1
    %133 = vsyncpa [#allocation6], 1
    %134 = vsyncpa [#allocation9], 1
    %135 = vsyncpa [#allocation4], 1

</llo_original>
